<compile_context>
chip_gen: v5e
topology: v5e:2x2
jax: 0.10.0
libtpu: 0.0.40
codegen_flags: <defaults>
</compile_context>

<pallas_src>
import jax
import jax.numpy as jnp
from jax import lax
from jax.experimental import pallas as pl
from jax.experimental.pallas import tpu as pltpu


def attention_kernel(x_ref, wqkv_ref, bqkv_ref, wo_ref, bo_ref, o_ref):
    # x_ref: (1, S, Din) bf16 -- one batch element per grid step.
    x = x_ref[0]                                              # (S, Din) bf16

    # Projections: bf16 MXU operands, f32 accumulation, f32 bias add.
    # The 1/sqrt(Dout) score scale is already folded into wqkv_ref[0]/bqkv_ref[0].
    q = jnp.dot(x, wqkv_ref[0], preferred_element_type=jnp.float32) + bqkv_ref[0]
    k = jnp.dot(x, wqkv_ref[1], preferred_element_type=jnp.float32) + bqkv_ref[1]
    v = jnp.dot(x, wqkv_ref[2], preferred_element_type=jnp.float32) + bqkv_ref[2]

    # Scores: contract the last dims directly (no explicit k.T / XLU transpose).
    s = lax.dot_general(q.astype(jnp.bfloat16), k.astype(jnp.bfloat16),
                        (((1,), (1,)), ((), ())),
                        preferred_element_type=jnp.float32)    # (S, S) f32

    # Numerically-stable softmax kept in f32; reciprocal goes to the EUP slot,
    # max/sum reductions to the XLU slot.
    m = jnp.max(s, axis=-1, keepdims=True)
    e = jnp.exp(s - m)
    denom = jnp.sum(e, axis=-1, keepdims=True)
    p = e * pl.reciprocal(denom, approx=True)

    # Weighted sum of values + output projection.
    ctx = jnp.dot(p.astype(jnp.bfloat16), v.astype(jnp.bfloat16),
                  preferred_element_type=jnp.float32)          # (S, Dout) f32
    out = jnp.dot(ctx.astype(jnp.bfloat16), wo_ref[...],
                  preferred_element_type=jnp.float32) + bo_ref[...]
    o_ref[0] = out.astype(o_ref.dtype)


def attention_module(x, params):
    """x: (B, S, Din) f32; params: dict with Wq,bq,Wk,bk,Wv,bv,Wo,bo.

    Weights are stored as (in, out), so y = x @ W + b (== PyTorch x @ W.T + b).
    """
    B, S, Din = x.shape
    Dout = params["Wq"].shape[1]
    scale = 1.0 / (Dout ** 0.5)

    # Host-side prep: fold the score scale into Q, stack Q/K/V weights on a
    # leading axis (free in-kernel slicing), cast MXU operands to bf16.
    wqkv = jnp.stack([params["Wq"] * scale, params["Wk"], params["Wv"]],
                     axis=0).astype(jnp.bfloat16)               # (3, Din, Dout)
    bqkv = jnp.stack([params["bq"] * scale, params["bk"], params["bv"]],
                     axis=0).reshape(3, 1, Dout)                # f32
    wo = params["Wo"].astype(jnp.bfloat16)                      # (Dout, Dout)
    bo = params["bo"].reshape(1, Dout)                          # f32
    x_bf16 = x.astype(jnp.bfloat16)

    # Cost estimate for the work actually performed (per-batch attention).
    flops = 2 * B * (3 * S * Din * Dout + 2 * S * S * Dout + S * Dout * Dout)
    transcendentals = B * S * S
    bytes_accessed = (2 * x_bf16.size + 2 * wqkv.size + 4 * bqkv.size
                      + 2 * wo.size + 4 * bo.size + 4 * B * S * Dout)

    out = pl.pallas_call(
        attention_kernel,
        out_shape=jax.ShapeDtypeStruct((B, S, Dout), jnp.float32),
        grid=(B,),
        in_specs=[
            pl.BlockSpec((1, S, Din), lambda b: (b, 0, 0)),     # per-batch x tile
            pl.BlockSpec((3, Din, Dout), lambda b: (0, 0, 0)),  # resident weights
            pl.BlockSpec((3, 1, Dout), lambda b: (0, 0, 0)),
            pl.BlockSpec((Dout, Dout), lambda b: (0, 0)),
            pl.BlockSpec((1, Dout), lambda b: (0, 0)),
        ],
        out_specs=pl.BlockSpec((1, S, Dout), lambda b: (b, 0, 0)),
        compiler_params=pltpu.CompilerParams(
            dimension_semantics=("parallel",),
            vmem_limit_bytes=32 * 1024 * 1024),
        cost_estimate=pl.CostEstimate(
            flops=flops, transcendentals=transcendentals,
            bytes_accessed=bytes_accessed),
    )(x_bf16, wqkv, bqkv, wo, bo)

    # TODO(synk): at production S/Dout, tile the q/kv sequence dims with an
    # online-softmax (flash-style) grid and pad Dout to a multiple of 128 so
    # the output store is lane-dense (unmasked vst).
    return out


def reference(x, params):
    """Pure-JAX reference matching the PyTorch forward semantics."""
    q = x @ params["Wq"] + params["bq"]
    k = x @ params["Wk"] + params["bk"]
    v = x @ params["Wv"] + params["bv"]
    d_out = q.shape[-1]
    scores = jnp.einsum("bqd,bkd->bqk", q, k) / (d_out ** 0.5)
    attn = jax.nn.softmax(scores, axis=2)
    ctx = jnp.einsum("bqk,bkd->bqd", attn, v)
    return ctx @ params["Wo"] + params["bo"]


def init_params(key, input_dim, output_dim):
    """Deterministic init mimicking nn.Linear's uniform(-1/sqrt(in), 1/sqrt(in))."""
    ks = jax.random.split(key, 8)

    def lin(kw, kb, din, dout):
        bound = 1.0 / (din ** 0.5)
        W = jax.random.uniform(kw, (din, dout), jnp.float32, -bound, bound)
        b = jax.random.uniform(kb, (dout,), jnp.float32, -bound, bound)
        return W, b

    Wq, bq = lin(ks[0], ks[1], input_dim, output_dim)
    Wk, bk = lin(ks[2], ks[3], input_dim, output_dim)
    Wv, bv = lin(ks[4], ks[5], input_dim, output_dim)
    Wo, bo = lin(ks[6], ks[7], output_dim, output_dim)
    return dict(Wq=Wq, bq=bq, Wk=Wk, bk=bk, Wv=Wv, bv=bv, Wo=Wo, bo=bo)


if __name__ == "__main__":
    key = jax.random.PRNGKey(0)
    k_x, k_p = jax.random.split(key)

    B, S, D_IN, D_OUT = 2, 8, 32, 32
    x = jax.random.normal(k_x, (B, S, D_IN), dtype=jnp.float32)
    params = init_params(k_p, D_IN, D_OUT)

    out = attention_module(x, params)
    out = jax.block_until_ready(out)

    ref = reference(x, params)
    assert out.shape == (B, S, D_OUT)
    # bf16 MXU operands (f32 accumulation) + approximate reciprocal in the
    # softmax denominator -> relaxed tolerance vs the pure-f32 reference.
    max_abs_err = float(jnp.max(jnp.abs(out - ref)))
    assert jnp.allclose(out, ref, atol=3e-2, rtol=3e-2), max_abs_err

    print("KERNEL_OK")
</pallas_src>

<mosaic_0001>
module attributes {stable_mosaic.version = 11 : i64} {
  func.func @attention_kernel(%arg0: i32, %arg1: memref<1x8x32xbf16, #tpu.memory_space<vmem>>, %arg2: memref<3x32x32xbf16, #tpu.memory_space<vmem>>, %arg3: memref<3x1x32xf32, #tpu.memory_space<vmem>>, %arg4: memref<32x32xbf16, #tpu.memory_space<vmem>>, %arg5: memref<1x32xf32, #tpu.memory_space<vmem>>, %arg6: memref<1x8x32xf32, #tpu.memory_space<vmem>>) attributes {dimension_semantics = [#tpu.dimension_semantics<parallel>], iteration_bounds = array<i64: 2>, scalar_prefetch = 0 : i64, scratch_operands = 0 : i64, tpu.core_type = #tpu.core_type<tc>, window_params = [{transform_indices = @transform_0, window_bounds = array<i64: 1, 8, 32>}, {pipeline_mode = #tpu.pipeline_mode<synchronous>, transform_indices = @transform_1, window_bounds = array<i64: 3, 32, 32>}, {pipeline_mode = #tpu.pipeline_mode<synchronous>, transform_indices = @transform_2, window_bounds = array<i64: 3, 1, 32>}, {pipeline_mode = #tpu.pipeline_mode<synchronous>, transform_indices = @transform_3, window_bounds = array<i64: 32, 32>}, {pipeline_mode = #tpu.pipeline_mode<synchronous>, transform_indices = @transform_4, window_bounds = array<i64: 1, 32>}, {transform_indices = @transform_5, window_bounds = array<i64: 1, 8, 32>}]} {
    %c0 = arith.constant 0 : index
    %c0_0 = arith.constant 0 : index
    %c0_1 = arith.constant 0 : index
    %0 = vector.load %arg1[%c0, %c0_0, %c0_1] : memref<1x8x32xbf16, #tpu.memory_space<vmem>>, vector<1x8x32xbf16>
    %1 = vector.shape_cast %0 : vector<1x8x32xbf16> to vector<8x32xbf16>
    %c0_2 = arith.constant 0 : index
    %c0_3 = arith.constant 0 : index
    %c0_4 = arith.constant 0 : index
    %2 = vector.load %arg2[%c0_2, %c0_3, %c0_4] : memref<3x32x32xbf16, #tpu.memory_space<vmem>>, vector<1x32x32xbf16>
    %3 = vector.shape_cast %2 : vector<1x32x32xbf16> to vector<32x32xbf16>
    %cst = arith.constant dense<0.000000e+00> : vector<8x32xf32>
    %4 = tpu.matmul %1, %3, %cst {dimension_numbers = #tpu.dot_dimension_numbers<[1], [0], [0], [1], [0, 0, 1, 1], [], []>} : vector<8x32xbf16>, vector<32x32xbf16>, vector<8x32xf32> -> vector<8x32xf32>
    %c0_5 = arith.constant 0 : index
    %c0_6 = arith.constant 0 : index
    %c0_7 = arith.constant 0 : index
    %5 = vector.load %arg3[%c0_5, %c0_6, %c0_7] : memref<3x1x32xf32, #tpu.memory_space<vmem>>, vector<1x1x32xf32>
    %6 = vector.shape_cast %5 : vector<1x1x32xf32> to vector<1x32xf32>
    %7 = vector.broadcast %6 : vector<1x32xf32> to vector<8x32xf32>
    %8 = arith.addf %4, %7 : vector<8x32xf32>
    %c1 = arith.constant 1 : index
    %c0_8 = arith.constant 0 : index
    %c0_9 = arith.constant 0 : index
    %9 = vector.load %arg2[%c1, %c0_8, %c0_9] : memref<3x32x32xbf16, #tpu.memory_space<vmem>>, vector<1x32x32xbf16>
    %10 = vector.shape_cast %9 : vector<1x32x32xbf16> to vector<32x32xbf16>
    %cst_10 = arith.constant dense<0.000000e+00> : vector<8x32xf32>
    %11 = tpu.matmul %1, %10, %cst_10 {dimension_numbers = #tpu.dot_dimension_numbers<[1], [0], [0], [1], [0, 0, 1, 1], [], []>} : vector<8x32xbf16>, vector<32x32xbf16>, vector<8x32xf32> -> vector<8x32xf32>
    %c1_11 = arith.constant 1 : index
    %c0_12 = arith.constant 0 : index
    %c0_13 = arith.constant 0 : index
    %12 = vector.load %arg3[%c1_11, %c0_12, %c0_13] : memref<3x1x32xf32, #tpu.memory_space<vmem>>, vector<1x1x32xf32>
    %13 = vector.shape_cast %12 : vector<1x1x32xf32> to vector<1x32xf32>
    %14 = vector.broadcast %13 : vector<1x32xf32> to vector<8x32xf32>
    %15 = arith.addf %11, %14 : vector<8x32xf32>
    %c2 = arith.constant 2 : index
    %c0_14 = arith.constant 0 : index
    %c0_15 = arith.constant 0 : index
    %16 = vector.load %arg2[%c2, %c0_14, %c0_15] : memref<3x32x32xbf16, #tpu.memory_space<vmem>>, vector<1x32x32xbf16>
    %17 = vector.shape_cast %16 : vector<1x32x32xbf16> to vector<32x32xbf16>
    %cst_16 = arith.constant dense<0.000000e+00> : vector<8x32xf32>
    %18 = tpu.matmul %1, %17, %cst_16 {dimension_numbers = #tpu.dot_dimension_numbers<[1], [0], [0], [1], [0, 0, 1, 1], [], []>} : vector<8x32xbf16>, vector<32x32xbf16>, vector<8x32xf32> -> vector<8x32xf32>
    %c2_17 = arith.constant 2 : index
    %c0_18 = arith.constant 0 : index
    %c0_19 = arith.constant 0 : index
    %19 = vector.load %arg3[%c2_17, %c0_18, %c0_19] : memref<3x1x32xf32, #tpu.memory_space<vmem>>, vector<1x1x32xf32>
    %20 = vector.shape_cast %19 : vector<1x1x32xf32> to vector<1x32xf32>
    %21 = vector.broadcast %20 : vector<1x32xf32> to vector<8x32xf32>
    %22 = arith.addf %18, %21 : vector<8x32xf32>
    %23 = arith.truncf %8 : vector<8x32xf32> to vector<8x32xbf16>
    %24 = arith.truncf %15 : vector<8x32xf32> to vector<8x32xbf16>
    %cst_20 = arith.constant dense<0.000000e+00> : vector<8x8xf32>
    %25 = tpu.matmul %23, %24, %cst_20 {dimension_numbers = #tpu.dot_dimension_numbers<[1], [1], [0], [0], [0, 0, 1, 0], [], []>} : vector<8x32xbf16>, vector<8x32xbf16>, vector<8x8xf32> -> vector<8x8xf32>
    %cst_21 = arith.constant dense<0xFF800000> : vector<8xf32>
    %26 = vector.multi_reduction <maximumf>, %25, %cst_21 [1] : vector<8x8xf32> to vector<8xf32>
    %27 = vector.shape_cast %26 : vector<8xf32> to vector<8x1xf32>
    %28 = vector.broadcast %27 : vector<8x1xf32> to vector<8x8xf32>
    %29 = arith.subf %25, %28 : vector<8x8xf32>
    %30 = math.exp %29 : vector<8x8xf32>
    %cst_22 = arith.constant dense<0.000000e+00> : vector<8xf32>
    %31 = vector.multi_reduction <add>, %30, %cst_22 [1] : vector<8x8xf32> to vector<8xf32>
    %32 = vector.shape_cast %31 : vector<8xf32> to vector<8x1xf32>
    %33 = tpu.reciprocal %32 {approx = true} : vector<8x1xf32> -> vector<8x1xf32>
    %34 = vector.broadcast %33 : vector<8x1xf32> to vector<8x8xf32>
    %35 = arith.mulf %30, %34 : vector<8x8xf32>
    %36 = arith.truncf %35 : vector<8x8xf32> to vector<8x8xbf16>
    %37 = arith.truncf %22 : vector<8x32xf32> to vector<8x32xbf16>
    %cst_23 = arith.constant dense<0.000000e+00> : vector<8x32xf32>
    %38 = tpu.matmul %36, %37, %cst_23 {dimension_numbers = #tpu.dot_dimension_numbers<[1], [0], [0], [1], [0, 0, 1, 1], [], []>} : vector<8x8xbf16>, vector<8x32xbf16>, vector<8x32xf32> -> vector<8x32xf32>
    %39 = arith.truncf %38 : vector<8x32xf32> to vector<8x32xbf16>
    %c0_24 = arith.constant 0 : index
    %c0_25 = arith.constant 0 : index
    %40 = vector.load %arg4[%c0_24, %c0_25] : memref<32x32xbf16, #tpu.memory_space<vmem>>, vector<32x32xbf16>
    %cst_26 = arith.constant dense<0.000000e+00> : vector<8x32xf32>
    %41 = tpu.matmul %39, %40, %cst_26 {dimension_numbers = #tpu.dot_dimension_numbers<[1], [0], [0], [1], [0, 0, 1, 1], [], []>} : vector<8x32xbf16>, vector<32x32xbf16>, vector<8x32xf32> -> vector<8x32xf32>
    %c0_27 = arith.constant 0 : index
    %c0_28 = arith.constant 0 : index
    %42 = vector.load %arg5[%c0_27, %c0_28] : memref<1x32xf32, #tpu.memory_space<vmem>>, vector<1x32xf32>
    %43 = vector.broadcast %42 : vector<1x32xf32> to vector<8x32xf32>
    %44 = arith.addf %41, %43 : vector<8x32xf32>
    %c0_29 = arith.constant 0 : index
    %c0_30 = arith.constant 0 : index
    %c0_31 = arith.constant 0 : index
    %45 = vector.load %arg6[%c0_29, %c0_30, %c0_31] : memref<1x8x32xf32, #tpu.memory_space<vmem>>, vector<1x8x32xf32>
    %46 = vector.shape_cast %45 : vector<1x8x32xf32> to vector<8x32xf32>
    %47 = vector.shape_cast %44 : vector<8x32xf32> to vector<1x8x32xf32>
    tpu.vector_store %arg6[%c0_29, %c0_30, %c0_31], %47 {strides = array<i32>} : memref<1x8x32xf32, #tpu.memory_space<vmem>>, vector<1x8x32xf32>,
    return
  }
  func.func @transform_0(%arg0: i32) -> (i32, i32, i32) {
    %c0_i32 = arith.constant 0 : i32
    %c0_i32_0 = arith.constant 0 : i32
    %c0_i32_1 = arith.constant 0 : i32
    return %arg0, %c0_i32, %c0_i32_0 : i32, i32, i32
  }
  func.func @transform_1(%arg0: i32) -> (i32, i32, i32) {
    %c0_i32 = arith.constant 0 : i32
    %c0_i32_0 = arith.constant 0 : i32
    %c0_i32_1 = arith.constant 0 : i32
    %c0_i32_2 = arith.constant 0 : i32
    return %c0_i32, %c0_i32_0, %c0_i32_1 : i32, i32, i32
  }
  func.func @transform_2(%arg0: i32) -> (i32, i32, i32) {
    %c0_i32 = arith.constant 0 : i32
    %c0_i32_0 = arith.constant 0 : i32
    %c0_i32_1 = arith.constant 0 : i32
    %c0_i32_2 = arith.constant 0 : i32
    return %c0_i32, %c0_i32_0, %c0_i32_1 : i32, i32, i32
  }
  func.func @transform_3(%arg0: i32) -> (i32, i32) {
    %c0_i32 = arith.constant 0 : i32
    %c0_i32_0 = arith.constant 0 : i32
    %c0_i32_1 = arith.constant 0 : i32
    return %c0_i32, %c0_i32_0 : i32, i32
  }
  func.func @transform_4(%arg0: i32) -> (i32, i32) {
    %c0_i32 = arith.constant 0 : i32
    %c0_i32_0 = arith.constant 0 : i32
    %c0_i32_1 = arith.constant 0 : i32
    return %c0_i32, %c0_i32_0 : i32, i32
  }
  func.func @transform_5(%arg0: i32) -> (i32, i32, i32) {
    %c0_i32 = arith.constant 0 : i32
    %c0_i32_0 = arith.constant 0 : i32
    %c0_i32_1 = arith.constant 0 : i32
    return %arg0, %c0_i32, %c0_i32_0 : i32, i32, i32
  }
}

</mosaic_0001>

<llo_original>
// kernel: tpu_custom_call.1
$region0: #{tpu_custom_call.1}
  #allocation0 [shape = 'u32[]', space=smem, size = 0x4, offset = 0x4, fixed_abs, tag = 'smem constant byte address 0x4 - core index']
  #allocation1 [shape = 'u32[72,128]{1,0:T(1,128)}', space=vmem, size = 0x9000, scoped, tag = 'internal scratch']
  %s0 = inlined_call_operand.hbm [shape: bf16[2,8,32], index: 0, kind: input, shape index: {}]
  %s1 = inlined_call_operand.hbm [shape: bf16[3,32,32], index: 1, kind: input, shape index: {}]
  %s2 = inlined_call_operand.hbm [shape: f32[3,1,32], index: 2, kind: input, shape index: {}]
  %s3 = inlined_call_operand.hbm [shape: bf16[32,32], index: 3, kind: input, shape index: {}]
  %s4 = inlined_call_operand.vmem [shape: f32[1,32], index: 4, kind: input, shape index: {}]
  %s5 = inlined_call_operand.hbm [shape: f32[2,8,32], index: 5, kind: output, shape index: {}]
  %s6 = sld [smem:[#allocation0]]
  $region69: #{tpu_custom_call.1} parent=0
    _
  %s8 = ssub.s32 1, %s6
  %s9 = scalar_select 0, %s8, %s6
  $region1: #{tpu_custom_call.1} parent=0
    #allocation2 [shape = 'u8[4096]{0}', space=vmem, size = 0x1000, scoped, tag = 'input window, operand 0']
    #allocation3 [shape = 's32[2]{0}', space=sflag, size = 0x8, scoped, tag = 'scoped memory for tpu_custom_call.1']
    #allocation4 [shape = 's32[2]{0}', space=sflag, size = 0x8, scoped, tag = 'scoped memory for tpu_custom_call.1']
    #allocation5 [shape = 'u8[24576]{0}', space=vmem, size = 0x6000, scoped, tag = 'input window, operand 1, single buffered']
    #allocation6 [shape = 's32[1]{0}', space=sflag, size = 0x4, scoped, tag = 'scoped memory for tpu_custom_call.1']
    #allocation7 [shape = 'u8[1536]{0}', space=vmem, size = 0x800, scoped, tag = 'input window, operand 2, single buffered']
    #allocation8 [shape = 'u8[8192]{0}', space=vmem, size = 0x2000, scoped, tag = 'input window, operand 3, single buffered']
    #allocation9 [shape = 's32[1]{0}', space=sflag, size = 0x4, scoped, tag = 'scoped memory for tpu_custom_call.1']
    #allocation10 [shape = 'u8[8192]{0}', space=vmem, size = 0x2000, scoped, tag = 'output window, operand 0']
    %10 = vsyncpa [#allocation3], 0
    %s11 = scalar_lea.sflag [#allocation3], 1
    %12 = vsyncpa %s11, 0
    %13 = vsyncpa [#allocation6], 0
    %14 = vsyncpa [#allocation9], 0
    %15 = vsyncpa [#allocation4], 0
    %s16 = scalar_lea.sflag [#allocation4], 1
    %17 = vsyncpa %s16, 0
    loop: start=0, step=1, limit=4
    $region2: #{tpu_custom_call.1} parent=1 // loop_pre_header
      _
    $region3: #{tpu_custom_call.1} parent=1 // loop_header
      %s19 = sphi 0, %s23
      %p20 = scmp.ge.s32.totalorder %s19, 4
      %s29 = sphi 0, %s31
      %s32 = sphi 0, %s29
      %s33 = sphi 0, %s32
      %s49 = sphi 0, %s33
      %s53 = sphi 0, %s53
      %s55 = sphi 0, %s53
      %s56 = sphi 0, %s55
      %s70 = sphi 0, %s56
      %s74 = sphi 0, %s74
      %s76 = sphi 0, %s74
      %s77 = sphi 0, %s76
      %s91 = sphi 0, %s77
      %s95 = sphi 0, %s95
      %s97 = sphi 0, %s95
      %s98 = sphi 0, %s97
      %s112 = sphi 0, %s98
      %s116 = sphi 0, %s116
      %s118 = sphi 0, %s116
      %s119 = sphi 0, %s118
      %s133 = sphi 0, %s119
      %s139 = sphi 0, %s141
      %s142 = sphi 0, %s139
      %s143 = sphi 0, %s142
      %s159 = sphi 0, %s143
    $region4: #{tpu_custom_call.1} parent=1 // loop_header_branch
      %22 = sbr.rel (%p20) target = $region8
    $region5: #{tpu_custom_call.1} parent=1 // loop_body
      %s24 = ssub.s32 %s19, 1
      %s25 = ssub.s32 %s19, 2
      %s26 = sadd.s32 %s19, 1
      %s27 = ssub.s32 %s19, %s26
      %p28 = scmp.eq.s32.totalorder %s27, 0
      %s30 = sadd.s32 %s29, 1
      %s31 = scalar_select %p28, %s29, %s30
      %p34 = pneg %p28
      %p35 = scmp.eq.s32.totalorder %s19, 1
      %p36 = por %p34, %p35
      %p37 = scmp.ne.s32.totalorder %s29, %s32
      %p38 = scmp.eq.s32.totalorder %s19, 0
      %p39 = por %p37, %p38
      %p40 = scmp.ne.s32.totalorder %s29, %s32
      %p41 = scmp.eq.s32.totalorder %s24, 1
      %p42 = por %p40, %p41
      %p43 = scmp.ne.s32.totalorder %s32, %s33
      %p44 = scmp.eq.s32.totalorder %s24, 0
      %p45 = por %p43, %p44
      %p46 = scmp.ne.s32.totalorder %s32, %s33
      %p47 = scmp.eq.s32.totalorder %s25, 1
      %p48 = por %p46, %p47
      %p50 = scmp.ne.s32.totalorder %s33, %s49
      %p51 = scmp.eq.s32.totalorder %s25, 0
      %p52 = por %p50, %p51
      %s54 = sadd.s32 %s53, 1
      %p57 = scmp.eq.s32.totalorder %s19, 1
      %p58 = scmp.ne.s32.totalorder %s53, %s55
      %p59 = scmp.eq.s32.totalorder %s19, 0
      %p60 = por %p58, %p59
      %p61 = scmp.ne.s32.totalorder %s53, %s55
      %p62 = scmp.eq.s32.totalorder %s24, 1
      %p63 = por %p61, %p62
      %p64 = scmp.ne.s32.totalorder %s55, %s56
      %p65 = scmp.eq.s32.totalorder %s24, 0
      %p66 = por %p64, %p65
      %p67 = scmp.ne.s32.totalorder %s55, %s56
      %p68 = scmp.eq.s32.totalorder %s25, 1
      %p69 = por %p67, %p68
      %p71 = scmp.ne.s32.totalorder %s56, %s70
      %p72 = scmp.eq.s32.totalorder %s25, 0
      %p73 = por %p71, %p72
      %s75 = sadd.s32 %s74, 1
      %p78 = scmp.eq.s32.totalorder %s19, 1
      %p79 = scmp.ne.s32.totalorder %s74, %s76
      %p80 = scmp.eq.s32.totalorder %s19, 0
      %p81 = por %p79, %p80
      %p82 = scmp.ne.s32.totalorder %s74, %s76
      %p83 = scmp.eq.s32.totalorder %s24, 1
      %p84 = por %p82, %p83
      %p85 = scmp.ne.s32.totalorder %s76, %s77
      %p86 = scmp.eq.s32.totalorder %s24, 0
      %p87 = por %p85, %p86
      %p88 = scmp.ne.s32.totalorder %s76, %s77
      %p89 = scmp.eq.s32.totalorder %s25, 1
      %p90 = por %p88, %p89
      %p92 = scmp.ne.s32.totalorder %s77, %s91
      %p93 = scmp.eq.s32.totalorder %s25, 0
      %p94 = por %p92, %p93
      %s96 = sadd.s32 %s95, 1
      %p99 = scmp.eq.s32.totalorder %s19, 1
      %p100 = scmp.ne.s32.totalorder %s95, %s97
      %p101 = scmp.eq.s32.totalorder %s19, 0
      %p102 = por %p100, %p101
      %p103 = scmp.ne.s32.totalorder %s95, %s97
      %p104 = scmp.eq.s32.totalorder %s24, 1
      %p105 = por %p103, %p104
      %p106 = scmp.ne.s32.totalorder %s97, %s98
      %p107 = scmp.eq.s32.totalorder %s24, 0
      %p108 = por %p106, %p107
      %p109 = scmp.ne.s32.totalorder %s97, %s98
      %p110 = scmp.eq.s32.totalorder %s25, 1
      %p111 = por %p109, %p110
      %p113 = scmp.ne.s32.totalorder %s98, %s112
      %p114 = scmp.eq.s32.totalorder %s25, 0
      %p115 = por %p113, %p114
      %s117 = sadd.s32 %s116, 1
      %p120 = scmp.eq.s32.totalorder %s19, 1
      %p121 = scmp.ne.s32.totalorder %s116, %s118
      %p122 = scmp.eq.s32.totalorder %s19, 0
      %p123 = por %p121, %p122
      %p124 = scmp.ne.s32.totalorder %s116, %s118
      %p125 = scmp.eq.s32.totalorder %s24, 1
      %p126 = por %p124, %p125
      %p127 = scmp.ne.s32.totalorder %s118, %s119
      %p128 = scmp.eq.s32.totalorder %s24, 0
      %p129 = por %p127, %p128
      %p130 = scmp.ne.s32.totalorder %s118, %s119
      %p131 = scmp.eq.s32.totalorder %s25, 1
      %p132 = por %p130, %p131
      %p134 = scmp.ne.s32.totalorder %s119, %s133
      %p135 = scmp.eq.s32.totalorder %s25, 0
      %p136 = por %p134, %p135
      %s137 = ssub.s32 %s19, %s26
      %p138 = scmp.eq.s32.totalorder %s137, 0
      %s140 = sadd.s32 %s139, 1
      %s141 = scalar_select %p138, %s139, %s140
      %p144 = pneg %p138
      %p145 = scmp.eq.s32.totalorder %s19, 1
      %p146 = por %p144, %p145
      %p147 = scmp.ne.s32.totalorder %s139, %s142
      %p148 = scmp.eq.s32.totalorder %s19, 0
      %p149 = por %p147, %p148
      %p150 = scmp.ne.s32.totalorder %s139, %s142
      %p151 = scmp.eq.s32.totalorder %s24, 1
      %p152 = por %p150, %p151
      %p153 = scmp.ne.s32.totalorder %s142, %s143
      %p154 = scmp.eq.s32.totalorder %s24, 0
      %p155 = por %p153, %p154
      %p156 = scmp.ne.s32.totalorder %s142, %s143
      %p157 = scmp.eq.s32.totalorder %s25, 1
      %p158 = por %p156, %p157
      %p160 = scmp.ne.s32.totalorder %s143, %s159
      %p161 = scmp.eq.s32.totalorder %s25, 0
      %p162 = por %p160, %p161
      %p163 = scmp.le.s32.totalorder 1, %s19
      %p164 = scmp.lt.s32.totalorder %s19, 3
      %p165 = pnand %p163, %p164
      %p166 = pneg %p165
      // Predicated region
      $region9: #{tpu_custom_call.1} parent=5 // pred_check
        _
      $region10: #{tpu_custom_call.1} parent=5 // pred_check_branch
        %168 = sbr.rel (%p165) target = $region12
      $region11: #{tpu_custom_call.1} parent=5 // pred_region
        %s169 = ssub.s32 %s19, 1
        // Predicated region
        $region13: #{tpu_custom_call.1} parent=11 // pred_check
          %p170 = pneg %p66
        $region14: #{tpu_custom_call.1} parent=11 // pred_check_branch
          %172 = sbr.rel (%p170) target = $region16
        $region15: #{tpu_custom_call.1} parent=11 // pred_region
          %174 = vsyncadd [#allocation6], 0
          %s175 = sshll.u32 %s1, 4
          %s176 = int_to_ptr.hbm [resolvable:$true] %s175
          %s177 = sshll.u32 [#allocation5], 4
          %s178 = int_to_ptr.vmem [resolvable:$true] %s177
          %183 = dma.hbm_to_vmem [thread:$0]  %s176, 768, %s178, [#allocation6], 64, 64, 4
        $region16: #{tpu_custom_call.1} parent=11 // pred_fallthru
          _
        // Predicated region
        $region17: #{tpu_custom_call.1} parent=11 // pred_check
          %p184 = pneg %p87
        $region18: #{tpu_custom_call.1} parent=11 // pred_check_branch
          %186 = sbr.rel (%p184) target = $region20
        $region19: #{tpu_custom_call.1} parent=11 // pred_region
          %188 = vsyncadd [#allocation6], 0
          %s189 = sshll.u32 %s2, 4
          %s190 = int_to_ptr.hbm [resolvable:$true] %s189
          %s191 = sshll.u32 [#allocation7], 4
          %s192 = int_to_ptr.vmem [resolvable:$true] %s191
          %197 = dma.hbm_to_vmem [thread:$0]  %s190, 48, %s192, [#allocation6], 16, 16, 1
        $region20: #{tpu_custom_call.1} parent=11 // pred_fallthru
          _
        // Predicated region
        $region21: #{tpu_custom_call.1} parent=11 // pred_check
          %p198 = pneg %p108
        $region22: #{tpu_custom_call.1} parent=11 // pred_check_branch
          %200 = sbr.rel (%p198) target = $region24
        $region23: #{tpu_custom_call.1} parent=11 // pred_region
          %202 = vsyncadd [#allocation9], 0
          %s203 = sshll.u32 %s3, 4
          %s204 = int_to_ptr.hbm [resolvable:$true] %s203
          %s205 = sshll.u32 [#allocation8], 4
          %s206 = int_to_ptr.vmem [resolvable:$true] %s205
          %211 = dma.hbm_to_vmem [thread:$0]  %s204, 256, %s206, [#allocation9], 64, 64, 4
        $region24: #{tpu_custom_call.1} parent=11 // pred_fallthru
          _
        // Predicated region
        $region25: #{tpu_custom_call.1} parent=11 // pred_check
          %p212 = pneg %p129
        $region26: #{tpu_custom_call.1} parent=11 // pred_check_branch
          %214 = sbr.rel (%p212) target = $region28
        $region27: #{tpu_custom_call.1} parent=11 // pred_region
          _
        $region28: #{tpu_custom_call.1} parent=11 // pred_fallthru
          _
      $region12: #{tpu_custom_call.1} parent=5 // pred_fallthru
        _
      %p215 = scmp.lt.s32.totalorder %s19, 2
      // Predicated region
      $region29: #{tpu_custom_call.1} parent=5 // pred_check
        %p216 = pneg %p215
      $region30: #{tpu_custom_call.1} parent=5 // pred_check_branch
        %218 = sbr.rel (%p216) target = $region32
      $region31: #{tpu_custom_call.1} parent=5 // pred_region
        // Predicated region
        $region33: #{tpu_custom_call.1} parent=31 // pred_check
          %p219 = pneg %p39
        $region34: #{tpu_custom_call.1} parent=31 // pred_check_branch
          %221 = sbr.rel (%p219) target = $region36
        $region35: #{tpu_custom_call.1} parent=31 // pred_region
          %s222 = sand.u32 %s29, 1
          %s223 = scalar_lea.sflag [#allocation3], %s222
          %s224 = sand.u32 %s29, 1
          %s225 = smul.addr %s224, 4
          %s226 = scalar_lea.vmem [#allocation2], %s225
          %228 = vsyncadd %s223, 0
          %s229 = smul.addr %s19, 4
          %s230 = scalar_lea.hbm %s0, %s229
          %s232 = sshll.u32 %s230, 4
          %s233 = int_to_ptr.hbm [resolvable:$true] %s232
          %s234 = sshll.u32 %s226, 4
          %s235 = int_to_ptr.vmem [resolvable:$true] %s234
          %237 = dma.hbm_to_vmem [thread:$0]  %s233, 64, %s235, %s223
        $region36: #{tpu_custom_call.1} parent=31 // pred_fallthru
          _
      $region32: #{tpu_custom_call.1} parent=5 // pred_fallthru
        _
      %p238 = scmp.le.s32.totalorder 1, %s19
      %p239 = scmp.lt.s32.totalorder %s19, 3
      %p240 = pnand %p238, %p239
      %p241 = pneg %p240
      // Predicated region
      $region37: #{tpu_custom_call.1} parent=5 // pred_check
        _
      $region38: #{tpu_custom_call.1} parent=5 // pred_check_branch
        %243 = sbr.rel (%p240) target = $region40
      $region39: #{tpu_custom_call.1} parent=5 // pred_region
        %s244 = ssub.s32 %s19, 1
        %s245 = sand.u32 %s32, 1
        %s246 = scalar_lea.sflag [#allocation3], %s245
        %s247 = sand.u32 %s32, 1
        %s248 = smul.addr %s247, 4
        %s249 = scalar_lea.vmem [#allocation2], %s248
        // Predicated region
        $region41: #{tpu_custom_call.1} parent=39 // pred_check
          %p250 = pneg %p45
        $region42: #{tpu_custom_call.1} parent=39 // pred_check_branch
          %252 = sbr.rel (%p250) target = $region44
        $region43: #{tpu_custom_call.1} parent=39 // pred_region
          %254 = dma.done %s246, 64
        $region44: #{tpu_custom_call.1} parent=39 // pred_fallthru
          _
        // Predicated region
        $region45: #{tpu_custom_call.1} parent=39 // pred_check
          %p255 = pneg %p66
        $region46: #{tpu_custom_call.1} parent=39 // pred_check_branch
          %257 = sbr.rel (%p255) target = $region48
        $region47: #{tpu_custom_call.1} parent=39 // pred_region
          %259 = dma.done [#allocation6], 768
        $region48: #{tpu_custom_call.1} parent=39 // pred_fallthru
          _
        // Predicated region
        $region49: #{tpu_custom_call.1} parent=39 // pred_check
          %p260 = pneg %p87
        $region50: #{tpu_custom_call.1} parent=39 // pred_check_branch
          %262 = sbr.rel (%p260) target = $region52
        $region51: #{tpu_custom_call.1} parent=39 // pred_region
          %264 = dma.done [#allocation6], 48
        $region52: #{tpu_custom_call.1} parent=39 // pred_fallthru
          _
        // Predicated region
        $region53: #{tpu_custom_call.1} parent=39 // pred_check
          %p265 = pneg %p108
        $region54: #{tpu_custom_call.1} parent=39 // pred_check_branch
          %267 = sbr.rel (%p265) target = $region56
        $region55: #{tpu_custom_call.1} parent=39 // pred_region
          %269 = dma.done [#allocation9], 256
        $region56: #{tpu_custom_call.1} parent=39 // pred_fallthru
          _
        %s270 = sand.u32 %s32, 1
        %s271 = scalar_lea.sflag [#allocation3], %s270
        %s272 = sand.u32 %s32, 1
        %s273 = smul.addr %s272, 4
        %s274 = scalar_lea.vmem [#allocation2], %s273
        %p275 = pneg %p45
        %p276 = pneg %p42
        %p277 = pneg %p66
        %p278 = pneg %p63
        %p279 = pneg %p87
        %p280 = pneg %p84
        %p281 = pneg %p108
        %p282 = pneg %p105
        %p283 = pneg %p129
        %p284 = pneg %p126
        %p285 = pneg %p155
        %p286 = pneg %p152
        %s287 = sand.u32 %s142, 1
        %s288 = scalar_lea.sflag [#allocation4], %s287
        %s289 = sand.u32 %s142, 1
        %s290 = smul.addr %s289, 8
        %s291 = scalar_lea.vmem [#allocation10], %s290
        %v293 = vld [vmem:[%s249] sm:$0xf]
        %v294 = vld [vmem:[#allocation5] sm:$0xf]
        %v295 = vld [vmem:[#allocation5 + $0x4] sm:$0xf]
        %v296 = vld [vmem:[#allocation5 + $0x8] sm:$0xf]
        %v297 = vld [vmem:[#allocation5 + $0xc] sm:$0xf]
        %v298 = vld [vmem:[#allocation7] sm:$0x1]
        %v300 = vperm.slane %v298, 0
        %v306 = vunpack.c.l.b16 %v294
        %v307 = vunpack.c.l.b16 %v295
        %v308 = vunpack.c.l.b16 %v296
        %v309 = vunpack.c.l.b16 %v297
        %v310 = vpack.c.b16 %v307, %v306
        %v311 = vpack.c.b16 %v309, %v308
        %vm314 = vcmask 261120
        %v316 = vsel %vm314, %v293, 0
        %318 = vmatpush.bf16.msra.mxu0 0
        %319 = vmatpush.bf16.msra.mxu0 0
        %320 = vmatpush.bf16.msra.mxu0 0
        %321 = vmatpush.bf16.msra.mxu0 0
        %322 = vmatpush.bf16.msra.mxu0 0
        %323 = vmatpush.bf16.msra.mxu0 0
        %324 = vmatpush.bf16.msra.mxu0 %v311
        %325 = vmatpush.bf16.msra.mxu0 %v310
        %326 = vmatmul.bf16.gmra.mxu0 %v316
        %v327 = vpop.f32.mrf.mxu0
        %v328 = vadd.f32 %v300, %v327
        %v329 = vpop.f32.mrf.mxu0
        %330 = vdwg.mxu0
        %s331 = scalar_lea.vmem [#allocation5], 16
        %v332 = vld [vmem:[%s331] sm:$0xf]
        %v333 = vld [vmem:[%s331 + $0x4] sm:$0xf]
        %v334 = vld [vmem:[%s331 + $0x8] sm:$0xf]
        %v335 = vld [vmem:[%s331 + $0xc] sm:$0xf]
        %s336 = scalar_lea.vmem [#allocation7], 1
        %v337 = vld [vmem:[%s336] sm:$0x1]
        %v339 = vperm.slane %v337, 0
        %v345 = vunpack.c.l.b16 %v332
        %v346 = vunpack.c.l.b16 %v333
        %v347 = vunpack.c.l.b16 %v334
        %v348 = vunpack.c.l.b16 %v335
        %v349 = vpack.c.b16 %v346, %v345
        %v350 = vpack.c.b16 %v348, %v347
        %353 = vmatpush.bf16.msra.mxu0 0
        %354 = vmatpush.bf16.msra.mxu0 0
        %355 = vmatpush.bf16.msra.mxu0 0
        %356 = vmatpush.bf16.msra.mxu0 0
        %357 = vmatpush.bf16.msra.mxu0 0
        %358 = vmatpush.bf16.msra.mxu0 0
        %359 = vmatpush.bf16.msra.mxu0 %v350
        %360 = vmatpush.bf16.msra.mxu0 %v349
        %361 = vmatmul.bf16.gmra.mxu0 %v316
        %v362 = vpop.f32.mrf.mxu0
        %v363 = vadd.f32 %v339, %v362
        %v364 = vpop.f32.mrf.mxu0
        %365 = vdwg.mxu0
        %s366 = scalar_lea.vmem [#allocation5], 32
        %v367 = vld [vmem:[%s366] sm:$0xf]
        %v368 = vld [vmem:[%s366 + $0x4] sm:$0xf]
        %v369 = vld [vmem:[%s366 + $0x8] sm:$0xf]
        %v370 = vld [vmem:[%s366 + $0xc] sm:$0xf]
        %s371 = scalar_lea.vmem [#allocation7], 2
        %v372 = vld [vmem:[%s371] sm:$0x1]
        %v374 = vperm.slane %v372, 0
        %v380 = vunpack.c.l.b16 %v367
        %v381 = vunpack.c.l.b16 %v368
        %v382 = vunpack.c.l.b16 %v369
        %v383 = vunpack.c.l.b16 %v370
        %v384 = vpack.c.b16 %v381, %v380
        %v385 = vpack.c.b16 %v383, %v382
        %388 = vmatpush.bf16.msra.mxu0 0
        %389 = vmatpush.bf16.msra.mxu0 0
        %390 = vmatpush.bf16.msra.mxu0 0
        %391 = vmatpush.bf16.msra.mxu0 0
        %392 = vmatpush.bf16.msra.mxu0 0
        %393 = vmatpush.bf16.msra.mxu0 0
        %394 = vmatpush.bf16.msra.mxu0 %v385
        %395 = vmatpush.bf16.msra.mxu0 %v384
        %396 = vmatmul.bf16.gmra.mxu0 %v316
        %v397 = vpop.f32.mrf.mxu0
        %v398 = vadd.f32 %v374, %v397
        %v399 = vpop.f32.mrf.mxu0
        %400 = vdwg.mxu0
        %v401 = vpack.c.bf16 %v328, %v328
        %v402 = vpack.c.bf16 %v363, %v363
        %v404 = vsel %vm314, %v401, 0
        %v407 = vsel %vm314, %v402, 0
        %409 = vmatpush.bf16.xpose.msra.mxu0 0
        %410 = vmatpush.bf16.xpose.msra.mxu0 0
        %411 = vmatpush.bf16.xpose.msra.mxu0 0
        %412 = vmatpush.bf16.xpose.msra.mxu0 0
        %413 = vmatpush.bf16.xpose.msra.mxu0 0
        %414 = vmatpush.bf16.xpose.msra.mxu0 0
        %415 = vmatpush.bf16.xpose.msra.mxu0 0
        %416 = vmatpush.bf16.xpose.msra.mxu0 %v407
        %417 = vmatmul.bf16.gmra.mxu0 %v404
        %v418 = vpop.f32.mrf.mxu0
        %v419 = vadd.f32 0.0, %v418
        %v420 = vpop.f32.mrf.mxu0
        %421 = vdwg.mxu0
        %vm422 = vcmask 64512
        %v423 = vsel %vm422, %v419, -inf
        %424 = vmax.xlane.f32.xlu0 %v423
        %v425 = vpop.xlane.xlu0 %424
        %v426 = vsub.f32 %v419, %v425
        %v427 = vmul.f32 %v426, 1.442695
        %v428 = vpow.pop %v427
        %v429 = vsel %vm422, %v428, 0.0
        %430 = vadd.xlane.f32.xlu0 %v429
        %v431 = vpop.xlane.xlu0 %430
        %v432 = vrcp.pop %v431
        %v433 = vmul.f32 %v428, %v432
        %v434 = vpack.c.bf16 %v433, %v433
        %v435 = vpack.c.bf16 %v398, %v398
        %v437 = vsel %vm422, %v434, 0
        %vm439 = vcmask 1043456
        %v441 = vsel %vm439, %v435, 0
        %443 = vmatpush.bf16.msra.mxu0 0
        %444 = vmatpush.bf16.msra.mxu0 0
        %445 = vmatpush.bf16.msra.mxu0 0
        %446 = vmatpush.bf16.msra.mxu0 0
        %447 = vmatpush.bf16.msra.mxu0 0
        %448 = vmatpush.bf16.msra.mxu0 0
        %449 = vmatpush.bf16.msra.mxu0 0
        %450 = vmatpush.bf16.msra.mxu0 %v441
        %451 = vmatmul.bf16.gmra.mxu0 %v437
        %v452 = vpop.f32.mrf.mxu0
        %v453 = vadd.f32 0.0, %v452
        %v454 = vpop.f32.mrf.mxu0
        %455 = vdwg.mxu0
        %v456 = vpack.c.bf16 %v453, %v453
        %v457 = vld [vmem:[#allocation8] sm:$0xf]
        %v458 = vld [vmem:[#allocation8 + $0x4] sm:$0xf]
        %v459 = vld [vmem:[#allocation8 + $0x8] sm:$0xf]
        %v460 = vld [vmem:[#allocation8 + $0xc] sm:$0xf]
        %v461 = vld [vmem:[%s4] sm:$0x1]
        %v463 = vperm.slane %v461, 0
        %v469 = vunpack.c.l.b16 %v457
        %v470 = vunpack.c.l.b16 %v458
        %v471 = vunpack.c.l.b16 %v459
        %v472 = vunpack.c.l.b16 %v460
        %v473 = vpack.c.b16 %v470, %v469
        %v474 = vpack.c.b16 %v472, %v471
        %v478 = vsel %vm314, %v456, 0
        %480 = vmatpush.bf16.msra.mxu0 0
        %481 = vmatpush.bf16.msra.mxu0 0
        %482 = vmatpush.bf16.msra.mxu0 0
        %483 = vmatpush.bf16.msra.mxu0 0
        %484 = vmatpush.bf16.msra.mxu0 0
        %485 = vmatpush.bf16.msra.mxu0 0
        %486 = vmatpush.bf16.msra.mxu0 %v474
        %487 = vmatpush.bf16.msra.mxu0 %v473
        %488 = vmatmul.bf16.gmra.mxu0 %v478
        %v489 = vpop.f32.mrf.mxu0
        %v490 = vadd.f32 %v463, %v489
        %v491 = vpop.f32.mrf.mxu0
        %492 = vdwg.mxu0
        %493 = vst.msk [vmem:[%s291] sm:$0xff] %vm314, %v490
        %s494 = sand.u32 %s142, 1
        %s495 = scalar_lea.sflag [#allocation4], %s494
        %s496 = sand.u32 %s142, 1
        %s497 = smul.addr %s496, 8
        %s498 = scalar_lea.vmem [#allocation10], %s497
        // Predicated region
        $region57: #{tpu_custom_call.1} parent=39 // pred_check
          %p499 = pneg %p152
        $region58: #{tpu_custom_call.1} parent=39 // pred_check_branch
          %501 = sbr.rel (%p499) target = $region60
        $region59: #{tpu_custom_call.1} parent=39 // pred_region
          %503 = vsyncadd %s495, 0
          %s504 = smul.addr %s24, 8
          %s505 = scalar_lea.hbm %s5, %s504
          %s507 = sshll.u32 %s498, 4
          %s508 = int_to_ptr.vmem [resolvable:$true] %s507
          %s509 = sshll.u32 %s505, 4
          %s510 = int_to_ptr.hbm [resolvable:$true] %s509
          %512 = dma.vmem_to_hbm [thread:$0]  %s508, 128, %s510, %s495
        $region60: #{tpu_custom_call.1} parent=39 // pred_fallthru
          _
      $region40: #{tpu_custom_call.1} parent=5 // pred_fallthru
        _
      %p513 = scmp.le.s32.totalorder 2, %s19
      // Predicated region
      $region61: #{tpu_custom_call.1} parent=5 // pred_check
        %p514 = pneg %p513
      $region62: #{tpu_custom_call.1} parent=5 // pred_check_branch
        %516 = sbr.rel (%p514) target = $region64
      $region63: #{tpu_custom_call.1} parent=5 // pred_region
        %s517 = ssub.s32 %s19, 2
        // Predicated region
        $region65: #{tpu_custom_call.1} parent=63 // pred_check
          %p518 = pneg %p158
        $region66: #{tpu_custom_call.1} parent=63 // pred_check_branch
          %520 = sbr.rel (%p518) target = $region68
        $region67: #{tpu_custom_call.1} parent=63 // pred_region
          %s521 = sand.u32 %s143, 1
          %s522 = scalar_lea.sflag [#allocation4], %s521
          %s523 = sand.u32 %s143, 1
          %s524 = smul.addr %s523, 8
          %s525 = scalar_lea.vmem [#allocation10], %s524
          %527 = dma.done %s522, 128
        $region68: #{tpu_custom_call.1} parent=63 // pred_fallthru
          _
      $region64: #{tpu_custom_call.1} parent=5 // pred_fallthru
        _
    $region6: #{tpu_custom_call.1} parent=1 // loop_footer
      %s23 = sadd.s32 1, %s19
    $region7: #{tpu_custom_call.1} parent=1 // loop_footer_branch
      %18 = sbr.rel target = $region3
    $region8: #{tpu_custom_call.1} parent=1 // loop_exit
      _
    %528 = vsyncpa [#allocation3], 1
    %s529 = scalar_lea.sflag [#allocation3], 1
    %530 = vsyncpa %s529, 1
    %531 = vsyncpa [#allocation6], 1
    %532 = vsyncpa [#allocation9], 1
    %533 = vsyncpa [#allocation4], 1
    %s534 = scalar_lea.sflag [#allocation4], 1
    %535 = vsyncpa %s534, 1

</llo_original>
